<compile_context>
chip_gen: v5e
topology: v5e:2x2
jax: 0.10.0
libtpu: 0.0.40
codegen_flags: <defaults>
</compile_context>

<pallas_src>
import functools

import jax
import jax.numpy as jnp
from jax.experimental import pallas as pl
from jax.experimental.pallas import tpu as pltpu

_LANE = 128
_SUBLANE = 8
_MAX_TN = 8192                            # reduction chunk (multiple of 128)
_TARGET_BLOCK_BYTES = 2 * 1024 * 1024     # per input, per pipeline buffer


def _round_up(x, m):
    return ((x + m - 1) // m) * m


def _mse_loss_kernel(p_ref, t_ref, o_ref, *, scale):
    # p_ref / t_ref: (TB, TN) lane-dense tile of the flattened (B, F*T) inputs.
    # o_ref: (TB, 1) f32 output block, VMEM-resident across the reduction axis.
    ni = pl.program_id(1)

    @pl.when(ni == 0)
    def _init():
        o_ref[...] = jnp.zeros_like(o_ref)

    d = p_ref[...].astype(jnp.float32) - t_ref[...].astype(jnp.float32)
    o_ref[...] += jnp.sum(d * d, axis=1, keepdims=True)      # (TB, 1)

    @pl.when(ni == pl.num_programs(1) - 1)
    def _finalize():
        o_ref[...] = o_ref[...] * scale


def mse_loss(preds, targets, *, feature_reduction: str = "sum"):
    """Pallas equivalent of MSELoss.forward for (B, F, T) inputs -> (B, 1)."""
    assert preds.shape == targets.shape
    B, F, T = preds.shape
    N = F * T
    itemsize = jnp.dtype(preds.dtype).itemsize

    scale = (1.0 / F) if feature_reduction == "sum" else (1.0 / (F * T))

    # Flatten to lane-dense (B, F*T); free reshape for contiguous arrays.
    p2 = preds.reshape(B, N)
    t2 = targets.reshape(B, N)

    # Chunk the flattened reduction axis in multiples of 128 lanes.
    if N <= _MAX_TN:
        TN = _round_up(N, _LANE)
        N_pad = TN
    else:
        TN = _MAX_TN
        N_pad = _round_up(N, TN)

    # Batch rows per block: as many as fit the per-block byte budget.
    TB = max(1, _TARGET_BLOCK_BYTES // (TN * itemsize))
    if TB >= B:
        TB = B                      # one batch tile covering the full extent
        B_pad = B
    else:
        TB = max(_SUBLANE, (TB // _SUBLANE) * _SUBLANE)
        B_pad = _round_up(B, TB)

    # Zero-pad: (pad - pad)^2 == 0, so pads contribute nothing to the sums.
    if (N_pad != N) or (B_pad != B):
        p2 = jnp.pad(p2, ((0, B_pad - B), (0, N_pad - N)))
        t2 = jnp.pad(t2, ((0, B_pad - B), (0, N_pad - N)))

    nb = B_pad // TB
    nn = N_pad // TN

    kernel = functools.partial(_mse_loss_kernel, scale=scale)

    out = pl.pallas_call(
        kernel,
        out_shape=jax.ShapeDtypeStruct((B_pad, 1), jnp.float32),
        grid_spec=pltpu.PrefetchScalarGridSpec(
            num_scalar_prefetch=0,
            grid=(nb, nn),
            in_specs=[
                pl.BlockSpec((TB, TN), lambda bi, ni: (bi, ni)),
                pl.BlockSpec((TB, TN), lambda bi, ni: (bi, ni)),
            ],
            out_specs=pl.BlockSpec((TB, 1), lambda bi, ni: (bi, 0)),
        ),
        compiler_params=pltpu.CompilerParams(
            dimension_semantics=("parallel", "arbitrary"),
            vmem_limit_bytes=32 * 1024 * 1024,
        ),
        cost_estimate=pl.CostEstimate(
            flops=3 * B * N,
            transcendentals=0,
            bytes_accessed=2 * B * N * itemsize + B * 4,
        ),
    )(p2, t2)

    return out[:B]                                  # (B, 1)


def _mse_loss_ref(preds, targets, feature_reduction="sum"):
    x = jnp.square(preds.astype(jnp.float32) - targets.astype(jnp.float32))
    x = jnp.mean(x, axis=1)
    if feature_reduction == "sum":
        x = jnp.sum(x, axis=-1, keepdims=True)
    else:
        x = jnp.mean(x, axis=-1, keepdims=True)
    return x


if __name__ == "__main__":
    key = jax.random.PRNGKey(0)

    # Test 1: small shape, single grid step, no padding.
    k1, k2, k3, k4 = jax.random.split(key, 4)
    B, F, T = 2, 32, 16
    preds = jax.random.normal(k1, (B, F, T), dtype=jnp.float32)
    targets = jax.random.normal(k2, (B, F, T), dtype=jnp.float32)
    out = jax.block_until_ready(mse_loss(preds, targets, feature_reduction="sum"))
    ref = _mse_loss_ref(preds, targets, feature_reduction="sum")
    assert out.shape == (B, 1), out.shape
    assert jnp.allclose(out, ref, rtol=1e-5, atol=1e-5), (out, ref)

    # Test 2: unaligned F*T > one chunk (exercises padding + reduction axis),
    # 'mean' feature reduction.
    B2, F2, T2 = 8, 3, 3000   # F*T = 9000 -> two 8192-wide chunks after padding
    preds2 = jax.random.normal(k3, (B2, F2, T2), dtype=jnp.float32)
    targets2 = jax.random.normal(k4, (B2, F2, T2), dtype=jnp.float32)
    out2 = jax.block_until_ready(mse_loss(preds2, targets2, feature_reduction="mean"))
    ref2 = _mse_loss_ref(preds2, targets2, feature_reduction="mean")
    assert out2.shape == (B2, 1), out2.shape
    assert jnp.allclose(out2, ref2, rtol=1e-5, atol=1e-5), (out2, ref2)

    print("KERNEL_OK")
</pallas_src>

<mosaic_0001>
module attributes {stable_mosaic.version = 11 : i64} {
  func.func @_mse_loss_kernel(%arg0: i32, %arg1: i32, %arg2: memref<2x512xf32, #tpu.memory_space<vmem>>, %arg3: memref<2x512xf32, #tpu.memory_space<vmem>>, %arg4: memref<2x1xf32, #tpu.memory_space<vmem>>) attributes {dimension_semantics = [#tpu.dimension_semantics<parallel>, #tpu.dimension_semantics<arbitrary>], iteration_bounds = array<i64: 1, 1>, scalar_prefetch = 0 : i64, scratch_operands = 0 : i64, tpu.core_type = #tpu.core_type<tc>, window_params = [{transform_indices = @transform_0, window_bounds = array<i64: 2, 512>}, {transform_indices = @transform_1, window_bounds = array<i64: 2, 512>}, {transform_indices = @transform_2, window_bounds = array<i64: 2, 1>}]} {
    %c0_i32 = arith.constant 0 : i32
    %0 = arith.cmpi eq, %arg1, %c0_i32 : i32
    %1 = arith.extui %0 : i1 to i32
    %c0_i32_0 = arith.constant 0 : i32
    %2 = arith.cmpi ne, %1, %c0_i32_0 : i32
    scf.if %2 {
      %cst_10 = arith.constant 0.000000e+00 : f32
      %15 = vector.broadcast %cst_10 : f32 to vector<2x1xf32>
      %c0_11 = arith.constant 0 : index
      %c0_12 = arith.constant 0 : index
      %16 = vector.load %arg4[%c0_11, %c0_12] : memref<2x1xf32, #tpu.memory_space<vmem>>, vector<2x1xf32>
      tpu.vector_store %arg4[%c0_11, %c0_12], %15 {strides = array<i32>} : memref<2x1xf32, #tpu.memory_space<vmem>>, vector<2x1xf32>,
    } else {
    }
    %c0 = arith.constant 0 : index
    %c0_1 = arith.constant 0 : index
    %3 = vector.load %arg2[%c0, %c0_1] : memref<2x512xf32, #tpu.memory_space<vmem>>, vector<2x512xf32>
    %c0_2 = arith.constant 0 : index
    %c0_3 = arith.constant 0 : index
    %4 = vector.load %arg3[%c0_2, %c0_3] : memref<2x512xf32, #tpu.memory_space<vmem>>, vector<2x512xf32>
    %5 = arith.subf %3, %4 : vector<2x512xf32>
    %c0_4 = arith.constant 0 : index
    %c0_5 = arith.constant 0 : index
    %6 = vector.load %arg4[%c0_4, %c0_5] : memref<2x1xf32, #tpu.memory_space<vmem>>, vector<2x1xf32>
    %7 = arith.mulf %5, %5 : vector<2x512xf32>
    %cst = arith.constant dense<0.000000e+00> : vector<2xf32>
    %8 = vector.multi_reduction <add>, %7, %cst [1] : vector<2x512xf32> to vector<2xf32>
    %9 = vector.shape_cast %8 : vector<2xf32> to vector<2x1xf32>
    %10 = arith.addf %6, %9 : vector<2x1xf32>
    %c0_6 = arith.constant 0 : index
    %c0_7 = arith.constant 0 : index
    %11 = vector.load %arg4[%c0_6, %c0_7] : memref<2x1xf32, #tpu.memory_space<vmem>>, vector<2x1xf32>
    tpu.vector_store %arg4[%c0_6, %c0_7], %10 {strides = array<i32>} : memref<2x1xf32, #tpu.memory_space<vmem>>, vector<2x1xf32>,
    %c0_i32_8 = arith.constant 0 : i32
    %12 = arith.cmpi eq, %arg1, %c0_i32_8 : i32
    %13 = arith.extui %12 : i1 to i32
    %c0_i32_9 = arith.constant 0 : i32
    %14 = arith.cmpi ne, %13, %c0_i32_9 : i32
    scf.if %14 {
      %c0_10 = arith.constant 0 : index
      %c0_11 = arith.constant 0 : index
      %15 = vector.load %arg4[%c0_10, %c0_11] : memref<2x1xf32, #tpu.memory_space<vmem>>, vector<2x1xf32>
      %cst_12 = arith.constant 3.125000e-02 : f32
      %16 = vector.broadcast %cst_12 : f32 to vector<2x1xf32>
      %17 = arith.mulf %15, %16 : vector<2x1xf32>
      %c0_13 = arith.constant 0 : index
      %c0_14 = arith.constant 0 : index
      %18 = vector.load %arg4[%c0_13, %c0_14] : memref<2x1xf32, #tpu.memory_space<vmem>>, vector<2x1xf32>
      tpu.vector_store %arg4[%c0_13, %c0_14], %17 {strides = array<i32>} : memref<2x1xf32, #tpu.memory_space<vmem>>, vector<2x1xf32>,
    } else {
    }
    return
  }
  func.func @transform_0(%arg0: i32, %arg1: i32) -> (i32, i32) {
    %c0_i32 = arith.constant 0 : i32
    return %arg0, %arg1 : i32, i32
  }
  func.func @transform_1(%arg0: i32, %arg1: i32) -> (i32, i32) {
    %c0_i32 = arith.constant 0 : i32
    return %arg0, %arg1 : i32, i32
  }
  func.func @transform_2(%arg0: i32, %arg1: i32) -> (i32, i32) {
    %c0_i32 = arith.constant 0 : i32
    %c0_i32_0 = arith.constant 0 : i32
    return %arg0, %c0_i32 : i32, i32
  }
}

</mosaic_0001>

<llo_original>
// kernel: tpu_custom_call.1
$region0: #{tpu_custom_call.1}
  #allocation0 [shape = 'u32[]', space=smem, size = 0x4, offset = 0x4, fixed_abs, tag = 'smem constant byte address 0x4 - core index']
  #allocation1 [shape = 'u32[72,128]{1,0:T(1,128)}', space=vmem, size = 0x9000, scoped, tag = 'internal scratch']
  %s0 = inlined_call_operand.hbm [shape: f32[2,512], index: 0, kind: input, shape index: {}]
  %s1 = inlined_call_operand.hbm [shape: f32[2,512], index: 1, kind: input, shape index: {}]
  %s2 = inlined_call_operand.vmem [shape: f32[2,1], index: 2, kind: output, shape index: {}]
  %s3 = sld [smem:[#allocation0]]
  $region34: #{tpu_custom_call.1} parent=0
    _
  %s5 = ssub.s32 1, %s3
  %s6 = scalar_select 0, %s5, %s3
  $region1: #{tpu_custom_call.1} parent=0
    #allocation2 [shape = 'u8[4096]{0}', space=vmem, size = 0x1000, scoped, tag = 'input window, operand 0, single buffered']
    #allocation3 [shape = 's32[1]{0}', space=sflag, size = 0x4, scoped, tag = 'scoped memory for tpu_custom_call.1']
    #allocation4 [shape = 'u8[4096]{0}', space=vmem, size = 0x1000, scoped, tag = 'input window, operand 1, single buffered']
    #allocation5 [shape = 's32[1]{0}', space=sflag, size = 0x4, scoped, tag = 'scoped memory for tpu_custom_call.1']
    %7 = vsyncpa [#allocation3], 0
    %8 = vsyncpa [#allocation5], 0
    // Predicated region
    $region2: #{tpu_custom_call.1} parent=1 // pred_check
      _
    $region3: #{tpu_custom_call.1} parent=1 // pred_check_branch
      %10 = sbr.rel (0) target = $region5
    $region4: #{tpu_custom_call.1} parent=1 // pred_region
      %12 = vsyncadd [#allocation3], 0
      %s14 = sshll.u32 %s0, 4
      %s15 = int_to_ptr.hbm [resolvable:$true] %s14
      %s16 = sshll.u32 [#allocation2], 4
      %s17 = int_to_ptr.vmem [resolvable:$true] %s16
      %19 = dma.hbm_to_vmem [thread:$0]  %s15, 128, %s17, [#allocation3]
    $region5: #{tpu_custom_call.1} parent=1 // pred_fallthru
      _
    // Predicated region
    $region6: #{tpu_custom_call.1} parent=1 // pred_check
      _
    $region7: #{tpu_custom_call.1} parent=1 // pred_check_branch
      %21 = sbr.rel (0) target = $region9
    $region8: #{tpu_custom_call.1} parent=1 // pred_region
      %23 = vsyncadd [#allocation5], 0
      %s25 = sshll.u32 %s1, 4
      %s26 = int_to_ptr.hbm [resolvable:$true] %s25
      %s27 = sshll.u32 [#allocation4], 4
      %s28 = int_to_ptr.vmem [resolvable:$true] %s27
      %30 = dma.hbm_to_vmem [thread:$0]  %s26, 128, %s28, [#allocation5]
    $region9: #{tpu_custom_call.1} parent=1 // pred_fallthru
      _
    // Predicated region
    $region10: #{tpu_custom_call.1} parent=1 // pred_check
      _
    $region11: #{tpu_custom_call.1} parent=1 // pred_check_branch
      %32 = sbr.rel (0) target = $region13
    $region12: #{tpu_custom_call.1} parent=1 // pred_region
      %34 = dma.done [#allocation3], 128
    $region13: #{tpu_custom_call.1} parent=1 // pred_fallthru
      _
    // Predicated region
    $region14: #{tpu_custom_call.1} parent=1 // pred_check
      _
    $region15: #{tpu_custom_call.1} parent=1 // pred_check_branch
      %36 = sbr.rel (0) target = $region17
    $region16: #{tpu_custom_call.1} parent=1 // pred_region
      %38 = dma.done [#allocation5], 128
    $region17: #{tpu_custom_call.1} parent=1 // pred_fallthru
      _
    %p39 = scmp.eq.s32.totalorder 0, 0
    // Predicated region
    $region18: #{tpu_custom_call.1} parent=1 // pred_check
      %p40 = pneg %p39
    $region19: #{tpu_custom_call.1} parent=1 // pred_check_branch
      %42 = sbr.rel (%p40) target = $region21
    $region20: #{tpu_custom_call.1} parent=1 // pred_region
      %vm43 = vcmask 1024
      %44 = vst.msk [vmem:[%s2] sm:$0x3] %vm43, 0.0
    $region21: #{tpu_custom_call.1} parent=1 // pred_fallthru
      _
    %v45 = vld [vmem:[#allocation2] sm:$0xff]
    %v46 = vld [vmem:[#allocation4] sm:$0xff]
    %v47 = vsub.f32 %v45, %v46
    %v48 = vld [vmem:[%s2] sm:$0x3]
    %v49 = vmul.f32 %v47, %v47
    %51 = vst [vmem:[#allocation1] ss:$4 sm:$0xff] %v49
    %v52 = vld.sshfl [vmem:[#allocation1] sm:$0xff pattern:$0x73625140]
    %v53 = vld.sshfl [vmem:[#allocation1 + $0x8] sm:$0xff pattern:$0x73625140]
    %v54 = vld.sshfl [vmem:[#allocation1 + $0x10] sm:$0xff pattern:$0x73625140]
    %v55 = vld.sshfl [vmem:[#allocation1 + $0x18] sm:$0xff pattern:$0x73625140]
    %vm60 = vcmask 1041408
    %v61 = vsel %vm60, %v52, 0.0
    %v62 = vsel %vm60, %v53, 0.0
    %v63 = vadd.f32 %v61, %v62
    %v64 = vsel %vm60, %v54, 0.0
    %v65 = vadd.f32 %v63, %v64
    %v66 = vsel %vm60, %v55, 0.0
    %v67 = vadd.f32 %v65, %v66
    %68 = vadd.xlane.f32.xlu0 %v67
    %v69 = vpop.xlane.xlu0 %68
    %v70 = vadd.f32 %v48, %v69
    %vm71 = vcmask 1024
    %72 = vst.msk [vmem:[%s2] sm:$0x3] %vm71, %v70
    // Predicated region
    $region22: #{tpu_custom_call.1} parent=1 // pred_check
      %p73 = pneg %p39
    $region23: #{tpu_custom_call.1} parent=1 // pred_check_branch
      %75 = sbr.rel (%p73) target = $region25
    $region24: #{tpu_custom_call.1} parent=1 // pred_region
      %v76 = vld [vmem:[%s2] sm:$0x3]
      %v77 = vmul.f32 %v76, 0.03125
      %78 = vst.msk [vmem:[%s2] sm:$0x3] %vm71, %v77
    $region25: #{tpu_custom_call.1} parent=1 // pred_fallthru
      _
    // Predicated region
    $region26: #{tpu_custom_call.1} parent=1 // pred_check
      _
    $region27: #{tpu_custom_call.1} parent=1 // pred_check_branch
      %80 = sbr.rel (0) target = $region29
    $region28: #{tpu_custom_call.1} parent=1 // pred_region
      _
    $region29: #{tpu_custom_call.1} parent=1 // pred_fallthru
      _
    // Predicated region
    $region30: #{tpu_custom_call.1} parent=1 // pred_check
      _
    $region31: #{tpu_custom_call.1} parent=1 // pred_check_branch
      %82 = sbr.rel (0) target = $region33
    $region32: #{tpu_custom_call.1} parent=1 // pred_region
      _
    $region33: #{tpu_custom_call.1} parent=1 // pred_fallthru
      _
    %83 = vsyncpa [#allocation3], 1
    %84 = vsyncpa [#allocation5], 1

</llo_original>
